<compile_context>
chip_gen: v5e
topology: v5e:2x2
jax: 0.10.0
libtpu: 0.0.40
codegen_flags: <defaults>
</compile_context>

<pallas_src>
import functools
import math

import numpy as np
import jax
import jax.numpy as jnp
from jax.experimental import pallas as pl
from jax.experimental.pallas import tpu as pltpu

LEAKY_SLOPE = 0.01            # PyTorch nn.LeakyReLU default
LOG2PI = math.log(2.0 * math.pi)

# lane-padded widths
NP = 128   # padded n_dim
MP = 128   # padded m_dim
HP = 128   # padded num_layers

# column offsets of each Linear inside the fused weight/bias slabs
C_W1 = 0                    # encoder Linear(n, H)
C_W2 = C_W1 + HP            # encoder Linear(H, H)
C_ML = C_W2 + HP            # fused latent head: mu -> [C_ML, C_ML+MP), logvar -> [C_ML+MP, C_ML+2MP)
C_D1 = C_ML + 2 * MP        # decoder Linear(m, H)
C_D2 = C_D1 + HP            # decoder Linear(H, H)
C_D3 = C_D2 + HP            # decoder Linear(H, n)
C_END = C_D3 + NP           # = 896 total slab columns


def log_t_normalizing_const(nu, d):
    # log normalizing constant of a d-dim Student-t with nu dof
    return (math.lgamma((nu + d) / 2.0)
            - math.lgamma(nu / 2.0)
            - (d / 2.0) * math.log(nu * math.pi))


def _leaky(x):
    return jnp.where(x > 0, x, LEAKY_SLOPE * x)


def _vae_kernel(x_ref, eps_ref, w_ref, b_ref,
                recon_out, reg_out, total_out,
                *, n_dim, m_dim, nu, recon_sigma, reg_weight, K, B):
    f32 = jnp.float32
    x = x_ref[...]            # (B, NP)    padded feature lanes are zero
    eps = eps_ref[...]        # (K*B, MP)  padded lanes are zero; row = k*B + b

    def mm(a, lo, hi):
        # fused Linear: static lane-slice of the weight/bias slabs
        return (jnp.dot(a, w_ref[:, lo:hi], preferred_element_type=f32)
                + b_ref[:, lo:hi])

    # ---------------- encoder: eps-independent, computed exactly once --------
    h = _leaky(mm(x, C_W1, C_W1 + HP))
    h = _leaky(mm(h, C_W2, C_W2 + HP))
    # fused mu|logvar head: one (B,128)@(128,256) MXU pass, split by lanes
    ml = mm(h, C_ML, C_ML + 2 * MP)
    mu = ml[:, :MP]
    logvar = ml[:, MP:2 * MP]
    std = jnp.exp(0.5 * logvar)

    # -------- fold the K Monte-Carlo samples into the sublane/batch dim ------
    mu_all = jnp.concatenate([mu] * K, axis=0)          # (K*B, MP)
    std_all = jnp.concatenate([std] * K, axis=0)
    logvar_all = jnp.concatenate([logvar] * K, axis=0)
    x_all = jnp.concatenate([x] * K, axis=0)            # (K*B, NP)
    z = mu_all + std_all * eps                          # reparameterization

    # ---------------- decoder on the stacked (K*B, 128) tile -----------------
    d = _leaky(mm(z, C_D1, C_D1 + HP))
    d = _leaky(mm(d, C_D2, C_D2 + HP))
    mu_theta = mm(d, C_D3, C_D3 + NP)

    # ---------------- losses (divide by the true K*B, not padded rows) -------
    n_mask = (jax.lax.broadcasted_iota(jnp.int32, (1, NP), 1) < n_dim).astype(f32)
    m_mask = (jax.lax.broadcasted_iota(jnp.int32, (1, MP), 1) < m_dim).astype(f32)
    inv_rows = 1.0 / float(K * B)

    # recon: mean_k mean_b sum_n (mu_theta - x)^2 / sigma^2
    sq = n_mask * (mu_theta - x_all) ** 2
    recon = (jnp.sum(jnp.sum(sq, axis=1, keepdims=True), axis=0, keepdims=True)
             * (inv_rows / (recon_sigma ** 2)))                         # (1,1)

    # reg: single fused cross-lane reduction
    t_const = 2.0 * m_dim * log_t_normalizing_const(nu, 1)
    reg_inner = m_mask * ((nu + 1.0) * jnp.log(1.0 + (z * z) / nu)
                          - (LOG2PI + 1.0 + logvar_all))
    reg = (jnp.sum(jnp.sum(reg_inner, axis=1, keepdims=True), axis=0,
                   keepdims=True) * inv_rows - t_const)                 # (1,1)

    total = recon + reg_weight * reg

    recon_out[...] = recon
    reg_out[...] = reg
    total_out[...] = total


def disentangled_vae_forward(x_pad, eps_pad, w_slab, b_slab, *,
                             n_dim, m_dim, nu, recon_sigma, reg_weight, K):
    """x_pad: (B, NP) f32; eps_pad: (K*B, MP) f32 (row = k*B + b);
    w_slab: (128, 896) f32; b_slab: (1, 896) f32."""
    B = x_pad.shape[0]
    kernel = functools.partial(
        _vae_kernel,
        n_dim=n_dim, m_dim=m_dim, nu=float(nu),
        recon_sigma=float(recon_sigma), reg_weight=float(reg_weight),
        K=K, B=B)

    def full_spec(arr):
        nd = arr.ndim
        return pl.BlockSpec(arr.shape, lambda k, _nd=nd: (0,) * _nd)

    in_specs = [full_spec(a) for a in (x_pad, eps_pad, w_slab, b_slab)]
    out_specs = [pl.BlockSpec((1, 1), lambda k: (0, 0)) for _ in range(3)]
    out_shape = [jax.ShapeDtypeStruct((1, 1), jnp.float32) for _ in range(3)]

    recon, reg, total = pl.pallas_call(
        kernel,
        grid=(1,),
        in_specs=in_specs,
        out_specs=out_specs,
        out_shape=out_shape,
        compiler_params=pltpu.CompilerParams(
            dimension_semantics=("arbitrary",)),
    )(x_pad, eps_pad, w_slab, b_slab)

    return recon[0, 0], reg[0, 0], total[0, 0]


def make_slabs(key, n_dim, m_dim, num_layers):
    """PyTorch-default uniform init for all 7 Linear layers, packed into one
    (128, 896) weight slab (stored (in, out)) and one (1, 896) bias slab."""
    w_slab = np.zeros((HP, C_END), np.float32)
    b_slab = np.zeros((1, C_END), np.float32)
    layers = [
        (n_dim, num_layers, C_W1),        # encoder Linear(n, H)
        (num_layers, num_layers, C_W2),   # encoder Linear(H, H)
        (num_layers, m_dim, C_ML),        # latent_mu
        (num_layers, m_dim, C_ML + MP),   # latent_logvar
        (m_dim, num_layers, C_D1),        # decoder Linear(m, H)
        (num_layers, num_layers, C_D2),   # decoder Linear(H, H)
        (num_layers, n_dim, C_D3),        # decoder Linear(H, n)
    ]
    keys = jax.random.split(key, len(layers))
    for kk, (fan_in, fan_out, col) in zip(keys, layers):
        kw, kb = jax.random.split(kk)
        bound = 1.0 / math.sqrt(fan_in)
        w = jax.random.uniform(kw, (fan_in, fan_out), jnp.float32, -bound, bound)
        b = jax.random.uniform(kb, (fan_out,), jnp.float32, -bound, bound)
        w_slab[:fan_in, col:col + fan_out] = np.asarray(w)
        b_slab[0, col:col + fan_out] = np.asarray(b)
    return jnp.asarray(w_slab), jnp.asarray(b_slab)


def reference_forward(x, eps3, w_slab, b_slab, *,
                      n_dim, m_dim, nu, recon_sigma, reg_weight, num_layers, K):
    """Pure-JAX reference matching the PyTorch forward (eps3: (K, B, m_dim))."""
    w_np = np.asarray(w_slab)
    b_np = np.asarray(b_slab)

    def lin(a, fan_in, fan_out, col):
        w = jnp.asarray(w_np[:fan_in, col:col + fan_out])
        b = jnp.asarray(b_np[0, col:col + fan_out])
        return a @ w + b

    def leaky(a):
        return jnp.where(a > 0, a, LEAKY_SLOPE * a)

    h = leaky(lin(x, n_dim, num_layers, C_W1))
    h = leaky(lin(h, num_layers, num_layers, C_W2))
    mu = lin(h, num_layers, m_dim, C_ML)
    logvar = lin(h, num_layers, m_dim, C_ML + MP)
    std = jnp.exp(0.5 * logvar)
    t_const = 2.0 * m_dim * log_t_normalizing_const(nu, 1)

    mean_recon = mean_reg = mean_total = 0.0
    for k in range(K):
        z = mu + std * eps3[k]
        d = leaky(lin(z, m_dim, num_layers, C_D1))
        d = leaky(lin(d, num_layers, num_layers, C_D2))
        mu_theta = lin(d, num_layers, n_dim, C_D3)
        recon = jnp.mean(jnp.sum((mu_theta - x) ** 2, axis=1)) / recon_sigma ** 2
        reg_row = (-jnp.sum(LOG2PI + 1.0 + logvar, axis=1) - t_const
                   + (nu + 1.0) * jnp.sum(jnp.log(1.0 + z ** 2 / nu), axis=1))
        reg = jnp.mean(reg_row)
        total = recon + reg_weight * reg
        mean_recon += recon / K
        mean_reg += reg / K
        mean_total += total / K
    return mean_recon, mean_reg, mean_total


if __name__ == "__main__":
    # module hyperparameters (small / defaults)
    B = 8
    n_dim = 4
    m_dim = 2
    num_layers = 64
    nu = 3
    recon_sigma = 1.0
    reg_weight = 1.0
    K = 5  # sample_size_for_integral

    key = jax.random.PRNGKey(0)
    k_w, k_x, k_e = jax.random.split(key, 3)

    w_slab, b_slab = make_slabs(k_w, n_dim, m_dim, num_layers)

    # inputs
    x_real = jax.random.normal(k_x, (B, n_dim), jnp.float32)
    x_pad = jnp.zeros((B, NP), jnp.float32).at[:, :n_dim].set(x_real)

    # reparameterization noise for the K Monte-Carlo samples (torch.randn_like),
    # stacked so row index = k*B + b (matches the in-kernel concatenation).
    eps_real = jax.random.normal(k_e, (K, B, m_dim), jnp.float32)
    eps_pad = jnp.zeros((K * B, MP), jnp.float32).at[:, :m_dim].set(
        eps_real.reshape(K * B, m_dim))

    mean_recon, mean_reg, mean_total = disentangled_vae_forward(
        x_pad, eps_pad, w_slab, b_slab,
        n_dim=n_dim, m_dim=m_dim, nu=nu,
        recon_sigma=recon_sigma, reg_weight=reg_weight, K=K)
    jax.block_until_ready((mean_recon, mean_reg, mean_total))

    # correctness check against a pure-JAX reference of the PyTorch forward
    ref_recon, ref_reg, ref_total = reference_forward(
        x_real, eps_real, w_slab, b_slab,
        n_dim=n_dim, m_dim=m_dim, nu=nu, recon_sigma=recon_sigma,
        reg_weight=reg_weight, num_layers=num_layers, K=K)
    np.testing.assert_allclose(np.asarray(mean_recon), np.asarray(ref_recon),
                               rtol=2e-3, atol=2e-3)
    np.testing.assert_allclose(np.asarray(mean_reg), np.asarray(ref_reg),
                               rtol=2e-3, atol=2e-3)
    np.testing.assert_allclose(np.asarray(mean_total), np.asarray(ref_total),
                               rtol=2e-3, atol=2e-3)

    print("KERNEL_OK")
</pallas_src>

<mosaic_0001>
module attributes {stable_mosaic.version = 11 : i64} {
  func.func @_vae_kernel(%arg0: i32, %arg1: memref<8x128xf32, #tpu.memory_space<vmem>>, %arg2: memref<40x128xf32, #tpu.memory_space<vmem>>, %arg3: memref<128x896xf32, #tpu.memory_space<vmem>>, %arg4: memref<1x896xf32, #tpu.memory_space<vmem>>, %arg5: memref<1x1xf32, #tpu.memory_space<vmem>>, %arg6: memref<1x1xf32, #tpu.memory_space<vmem>>, %arg7: memref<1x1xf32, #tpu.memory_space<vmem>>) attributes {dimension_semantics = [#tpu.dimension_semantics<arbitrary>], iteration_bounds = array<i64: 1>, scalar_prefetch = 0 : i64, scratch_operands = 0 : i64, tpu.core_type = #tpu.core_type<tc>, window_params = [{pipeline_mode = #tpu.pipeline_mode<synchronous>, transform_indices = @transform_0, window_bounds = array<i64: 8, 128>}, {pipeline_mode = #tpu.pipeline_mode<synchronous>, transform_indices = @transform_1, window_bounds = array<i64: 40, 128>}, {pipeline_mode = #tpu.pipeline_mode<synchronous>, transform_indices = @transform_2, window_bounds = array<i64: 128, 896>}, {pipeline_mode = #tpu.pipeline_mode<synchronous>, transform_indices = @transform_3, window_bounds = array<i64: 1, 896>}, {pipeline_mode = #tpu.pipeline_mode<synchronous>, transform_indices = @transform_4, window_bounds = array<i64: 1, 1>}, {pipeline_mode = #tpu.pipeline_mode<synchronous>, transform_indices = @transform_5, window_bounds = array<i64: 1, 1>}, {pipeline_mode = #tpu.pipeline_mode<synchronous>, transform_indices = @transform_6, window_bounds = array<i64: 1, 1>}]} {
    %c0 = arith.constant 0 : index
    %c0_0 = arith.constant 0 : index
    %0 = vector.load %arg1[%c0, %c0_0] : memref<8x128xf32, #tpu.memory_space<vmem>>, vector<8x128xf32>
    %c0_1 = arith.constant 0 : index
    %c0_2 = arith.constant 0 : index
    %1 = vector.load %arg2[%c0_1, %c0_2] : memref<40x128xf32, #tpu.memory_space<vmem>>, vector<40x128xf32>
    %c0_3 = arith.constant 0 : index
    %c0_4 = arith.constant 0 : index
    %2 = vector.load %arg3[%c0_3, %c0_4] : memref<128x896xf32, #tpu.memory_space<vmem>>, vector<128x128xf32>
    %cst = arith.constant dense<0.000000e+00> : vector<8x128xf32>
    %3 = tpu.matmul %0, %2, %cst {dimension_numbers = #tpu.dot_dimension_numbers<[1], [0], [0], [1], [0, 0, 1, 1], [], []>} : vector<8x128xf32>, vector<128x128xf32>, vector<8x128xf32> -> vector<8x128xf32>
    %c0_5 = arith.constant 0 : index
    %c0_6 = arith.constant 0 : index
    %4 = vector.load %arg4[%c0_5, %c0_6] : memref<1x896xf32, #tpu.memory_space<vmem>>, vector<1x128xf32>
    %5 = vector.broadcast %4 : vector<1x128xf32> to vector<8x128xf32>
    %6 = arith.addf %3, %5 : vector<8x128xf32>
    %cst_7 = arith.constant 0.000000e+00 : f32
    %7 = vector.broadcast %cst_7 : f32 to vector<8x128xf32>
    %8 = arith.cmpf ogt, %6, %7 : vector<8x128xf32>
    %cst_8 = arith.constant 0.00999999977 : f32
    %9 = vector.broadcast %cst_8 : f32 to vector<8x128xf32>
    %10 = arith.mulf %9, %6 : vector<8x128xf32>
    %11 = arith.select %8, %6, %10 : vector<8x128xi1>, vector<8x128xf32>
    %c0_9 = arith.constant 0 : index
    %c128 = arith.constant 128 : index
    %12 = vector.load %arg3[%c0_9, %c128] : memref<128x896xf32, #tpu.memory_space<vmem>>, vector<128x128xf32>
    %cst_10 = arith.constant dense<0.000000e+00> : vector<8x128xf32>
    %13 = tpu.matmul %11, %12, %cst_10 {dimension_numbers = #tpu.dot_dimension_numbers<[1], [0], [0], [1], [0, 0, 1, 1], [], []>} : vector<8x128xf32>, vector<128x128xf32>, vector<8x128xf32> -> vector<8x128xf32>
    %c0_11 = arith.constant 0 : index
    %c128_12 = arith.constant 128 : index
    %14 = vector.load %arg4[%c0_11, %c128_12] : memref<1x896xf32, #tpu.memory_space<vmem>>, vector<1x128xf32>
    %15 = vector.broadcast %14 : vector<1x128xf32> to vector<8x128xf32>
    %16 = arith.addf %13, %15 : vector<8x128xf32>
    %cst_13 = arith.constant 0.000000e+00 : f32
    %17 = vector.broadcast %cst_13 : f32 to vector<8x128xf32>
    %18 = arith.cmpf ogt, %16, %17 : vector<8x128xf32>
    %cst_14 = arith.constant 0.00999999977 : f32
    %19 = vector.broadcast %cst_14 : f32 to vector<8x128xf32>
    %20 = arith.mulf %19, %16 : vector<8x128xf32>
    %21 = arith.select %18, %16, %20 : vector<8x128xi1>, vector<8x128xf32>
    %c0_15 = arith.constant 0 : index
    %c256 = arith.constant 256 : index
    %22 = vector.load %arg3[%c0_15, %c256] : memref<128x896xf32, #tpu.memory_space<vmem>>, vector<128x256xf32>
    %cst_16 = arith.constant dense<0.000000e+00> : vector<8x256xf32>
    %23 = tpu.matmul %21, %22, %cst_16 {dimension_numbers = #tpu.dot_dimension_numbers<[1], [0], [0], [1], [0, 0, 1, 1], [], []>} : vector<8x128xf32>, vector<128x256xf32>, vector<8x256xf32> -> vector<8x256xf32>
    %c0_17 = arith.constant 0 : index
    %c256_18 = arith.constant 256 : index
    %24 = vector.load %arg4[%c0_17, %c256_18] : memref<1x896xf32, #tpu.memory_space<vmem>>, vector<1x256xf32>
    %25 = vector.broadcast %24 : vector<1x256xf32> to vector<8x256xf32>
    %26 = arith.addf %23, %25 : vector<8x256xf32>
    %27 = vector.extract_strided_slice %26 {offsets = [0, 0], sizes = [8, 128], strides = [1, 1]} : vector<8x256xf32> to vector<8x128xf32>
    %28 = vector.extract_strided_slice %26 {offsets = [0, 128], sizes = [8, 128], strides = [1, 1]} : vector<8x256xf32> to vector<8x128xf32>
    %cst_19 = arith.constant 5.000000e-01 : f32
    %29 = vector.broadcast %cst_19 : f32 to vector<8x128xf32>
    %30 = arith.mulf %29, %28 : vector<8x128xf32>
    %31 = math.exp %30 : vector<8x128xf32>
    %32 = tpu.concatenate %27, %27, %27, %27, %27 in 0 : vector<8x128xf32>, vector<8x128xf32>, vector<8x128xf32>, vector<8x128xf32>, vector<8x128xf32> -> vector<40x128xf32>
    %33 = tpu.concatenate %31, %31, %31, %31, %31 in 0 : vector<8x128xf32>, vector<8x128xf32>, vector<8x128xf32>, vector<8x128xf32>, vector<8x128xf32> -> vector<40x128xf32>
    %34 = tpu.concatenate %28, %28, %28, %28, %28 in 0 : vector<8x128xf32>, vector<8x128xf32>, vector<8x128xf32>, vector<8x128xf32>, vector<8x128xf32> -> vector<40x128xf32>
    %35 = tpu.concatenate %0, %0, %0, %0, %0 in 0 : vector<8x128xf32>, vector<8x128xf32>, vector<8x128xf32>, vector<8x128xf32>, vector<8x128xf32> -> vector<40x128xf32>
    %36 = arith.mulf %33, %1 : vector<40x128xf32>
    %37 = arith.addf %32, %36 : vector<40x128xf32>
    %c0_20 = arith.constant 0 : index
    %c512 = arith.constant 512 : index
    %38 = vector.load %arg3[%c0_20, %c512] : memref<128x896xf32, #tpu.memory_space<vmem>>, vector<128x128xf32>
    %cst_21 = arith.constant dense<0.000000e+00> : vector<40x128xf32>
    %39 = tpu.matmul %37, %38, %cst_21 {dimension_numbers = #tpu.dot_dimension_numbers<[1], [0], [0], [1], [0, 0, 1, 1], [], []>} : vector<40x128xf32>, vector<128x128xf32>, vector<40x128xf32> -> vector<40x128xf32>
    %c0_22 = arith.constant 0 : index
    %c512_23 = arith.constant 512 : index
    %40 = vector.load %arg4[%c0_22, %c512_23] : memref<1x896xf32, #tpu.memory_space<vmem>>, vector<1x128xf32>
    %41 = vector.broadcast %40 : vector<1x128xf32> to vector<40x128xf32>
    %42 = arith.addf %39, %41 : vector<40x128xf32>
    %cst_24 = arith.constant 0.000000e+00 : f32
    %43 = vector.broadcast %cst_24 : f32 to vector<40x128xf32>
    %44 = arith.cmpf ogt, %42, %43 : vector<40x128xf32>
    %cst_25 = arith.constant 0.00999999977 : f32
    %45 = vector.broadcast %cst_25 : f32 to vector<40x128xf32>
    %46 = arith.mulf %45, %42 : vector<40x128xf32>
    %47 = arith.select %44, %42, %46 : vector<40x128xi1>, vector<40x128xf32>
    %c0_26 = arith.constant 0 : index
    %c640 = arith.constant 640 : index
    %48 = vector.load %arg3[%c0_26, %c640] : memref<128x896xf32, #tpu.memory_space<vmem>>, vector<128x128xf32>
    %cst_27 = arith.constant dense<0.000000e+00> : vector<40x128xf32>
    %49 = tpu.matmul %47, %48, %cst_27 {dimension_numbers = #tpu.dot_dimension_numbers<[1], [0], [0], [1], [0, 0, 1, 1], [], []>} : vector<40x128xf32>, vector<128x128xf32>, vector<40x128xf32> -> vector<40x128xf32>
    %c0_28 = arith.constant 0 : index
    %c640_29 = arith.constant 640 : index
    %50 = vector.load %arg4[%c0_28, %c640_29] : memref<1x896xf32, #tpu.memory_space<vmem>>, vector<1x128xf32>
    %51 = vector.broadcast %50 : vector<1x128xf32> to vector<40x128xf32>
    %52 = arith.addf %49, %51 : vector<40x128xf32>
    %cst_30 = arith.constant 0.000000e+00 : f32
    %53 = vector.broadcast %cst_30 : f32 to vector<40x128xf32>
    %54 = arith.cmpf ogt, %52, %53 : vector<40x128xf32>
    %cst_31 = arith.constant 0.00999999977 : f32
    %55 = vector.broadcast %cst_31 : f32 to vector<40x128xf32>
    %56 = arith.mulf %55, %52 : vector<40x128xf32>
    %57 = arith.select %54, %52, %56 : vector<40x128xi1>, vector<40x128xf32>
    %c0_32 = arith.constant 0 : index
    %c768 = arith.constant 768 : index
    %58 = vector.load %arg3[%c0_32, %c768] : memref<128x896xf32, #tpu.memory_space<vmem>>, vector<128x128xf32>
    %cst_33 = arith.constant dense<0.000000e+00> : vector<40x128xf32>
    %59 = tpu.matmul %57, %58, %cst_33 {dimension_numbers = #tpu.dot_dimension_numbers<[1], [0], [0], [1], [0, 0, 1, 1], [], []>} : vector<40x128xf32>, vector<128x128xf32>, vector<40x128xf32> -> vector<40x128xf32>
    %c0_34 = arith.constant 0 : index
    %c768_35 = arith.constant 768 : index
    %60 = vector.load %arg4[%c0_34, %c768_35] : memref<1x896xf32, #tpu.memory_space<vmem>>, vector<1x128xf32>
    %61 = vector.broadcast %60 : vector<1x128xf32> to vector<40x128xf32>
    %62 = arith.addf %59, %61 : vector<40x128xf32>
    %63 = tpu.iota {dimensions = array<i32: 1>} : vector<1x128xi32>
    %c4_i32 = arith.constant 4 : i32
    %64 = vector.broadcast %c4_i32 : i32 to vector<1x128xi32>
    %65 = arith.cmpi slt, %63, %64 : vector<1x128xi32>
    %66 = arith.extui %65 : vector<1x128xi1> to vector<1x128xi32>
    %67 = arith.sitofp %66 : vector<1x128xi32> to vector<1x128xf32>
    %68 = tpu.iota {dimensions = array<i32: 1>} : vector<1x128xi32>
    %c2_i32 = arith.constant 2 : i32
    %69 = vector.broadcast %c2_i32 : i32 to vector<1x128xi32>
    %70 = arith.cmpi slt, %68, %69 : vector<1x128xi32>
    %71 = arith.extui %70 : vector<1x128xi1> to vector<1x128xi32>
    %72 = arith.sitofp %71 : vector<1x128xi32> to vector<1x128xf32>
    %73 = arith.subf %62, %35 : vector<40x128xf32>
    %74 = arith.mulf %73, %73 : vector<40x128xf32>
    %75 = vector.broadcast %67 : vector<1x128xf32> to vector<40x128xf32>
    %76 = arith.mulf %75, %74 : vector<40x128xf32>
    %cst_36 = arith.constant dense<0.000000e+00> : vector<40xf32>
    %77 = vector.multi_reduction <add>, %76, %cst_36 [1] : vector<40x128xf32> to vector<40xf32>
    %78 = vector.shape_cast %77 : vector<40xf32> to vector<40x1xf32>
    %cst_37 = arith.constant dense<0.000000e+00> : vector<1xf32>
    %79 = vector.multi_reduction <add>, %78, %cst_37 [0] : vector<40x1xf32> to vector<1xf32>
    %80 = vector.shape_cast %79 : vector<1xf32> to vector<1x1xf32>
    %cst_38 = arith.constant 2.500000e-02 : f32
    %81 = vector.broadcast %cst_38 : f32 to vector<1x1xf32>
    %82 = arith.mulf %80, %81 : vector<1x1xf32>
    %83 = arith.mulf %37, %37 : vector<40x128xf32>
    %cst_39 = arith.constant 3.000000e+00 : f32
    %84 = vector.broadcast %cst_39 : f32 to vector<40x128xf32>
    %85 = arith.divf %83, %84 : vector<40x128xf32>
    %cst_40 = arith.constant 1.000000e+00 : f32
    %86 = vector.broadcast %cst_40 : f32 to vector<40x128xf32>
    %87 = arith.addf %86, %85 : vector<40x128xf32>
    %88 = math.log %87 : vector<40x128xf32>
    %cst_41 = arith.constant 4.000000e+00 : f32
    %89 = vector.broadcast %cst_41 : f32 to vector<40x128xf32>
    %90 = arith.mulf %89, %88 : vector<40x128xf32>
    %cst_42 = arith.constant 2.83787704 : f32
    %91 = vector.broadcast %cst_42 : f32 to vector<40x128xf32>
    %92 = arith.addf %91, %34 : vector<40x128xf32>
    %93 = arith.subf %90, %92 : vector<40x128xf32>
    %94 = vector.broadcast %72 : vector<1x128xf32> to vector<40x128xf32>
    %95 = arith.mulf %94, %93 : vector<40x128xf32>
    %cst_43 = arith.constant dense<0.000000e+00> : vector<40xf32>
    %96 = vector.multi_reduction <add>, %95, %cst_43 [1] : vector<40x128xf32> to vector<40xf32>
    %97 = vector.shape_cast %96 : vector<40xf32> to vector<40x1xf32>
    %cst_44 = arith.constant dense<0.000000e+00> : vector<1xf32>
    %98 = vector.multi_reduction <add>, %97, %cst_44 [0] : vector<40x1xf32> to vector<1xf32>
    %99 = vector.shape_cast %98 : vector<1xf32> to vector<1x1xf32>
    %cst_45 = arith.constant 2.500000e-02 : f32
    %100 = vector.broadcast %cst_45 : f32 to vector<1x1xf32>
    %101 = arith.mulf %99, %100 : vector<1x1xf32>
    %cst_46 = arith.constant -4.0035553 : f32
    %102 = vector.broadcast %cst_46 : f32 to vector<1x1xf32>
    %103 = arith.subf %101, %102 : vector<1x1xf32>
    %cst_47 = arith.constant 1.000000e+00 : f32
    %104 = vector.broadcast %cst_47 : f32 to vector<1x1xf32>
    %105 = arith.mulf %104, %103 : vector<1x1xf32>
    %106 = arith.addf %82, %105 : vector<1x1xf32>
    %c0_48 = arith.constant 0 : index
    %c0_49 = arith.constant 0 : index
    %107 = vector.load %arg5[%c0_48, %c0_49] : memref<1x1xf32, #tpu.memory_space<vmem>>, vector<1x1xf32>
    tpu.vector_store %arg5[%c0_48, %c0_49], %82 {strides = array<i32>} : memref<1x1xf32, #tpu.memory_space<vmem>>, vector<1x1xf32>,
    %c0_50 = arith.constant 0 : index
    %c0_51 = arith.constant 0 : index
    %108 = vector.load %arg6[%c0_50, %c0_51] : memref<1x1xf32, #tpu.memory_space<vmem>>, vector<1x1xf32>
    tpu.vector_store %arg6[%c0_50, %c0_51], %103 {strides = array<i32>} : memref<1x1xf32, #tpu.memory_space<vmem>>, vector<1x1xf32>,
    %c0_52 = arith.constant 0 : index
    %c0_53 = arith.constant 0 : index
    %109 = vector.load %arg7[%c0_52, %c0_53] : memref<1x1xf32, #tpu.memory_space<vmem>>, vector<1x1xf32>
    tpu.vector_store %arg7[%c0_52, %c0_53], %106 {strides = array<i32>} : memref<1x1xf32, #tpu.memory_space<vmem>>, vector<1x1xf32>,
    return
  }
  func.func @transform_0(%arg0: i32) -> (i32, i32) {
    %c0_i32 = arith.constant 0 : i32
    %c0_i32_0 = arith.constant 0 : i32
    %c0_i32_1 = arith.constant 0 : i32
    return %c0_i32, %c0_i32_0 : i32, i32
  }
  func.func @transform_1(%arg0: i32) -> (i32, i32) {
    %c0_i32 = arith.constant 0 : i32
    %c0_i32_0 = arith.constant 0 : i32
    %c0_i32_1 = arith.constant 0 : i32
    return %c0_i32, %c0_i32_0 : i32, i32
  }
  func.func @transform_2(%arg0: i32) -> (i32, i32) {
    %c0_i32 = arith.constant 0 : i32
    %c0_i32_0 = arith.constant 0 : i32
    %c0_i32_1 = arith.constant 0 : i32
    return %c0_i32, %c0_i32_0 : i32, i32
  }
  func.func @transform_3(%arg0: i32) -> (i32, i32) {
    %c0_i32 = arith.constant 0 : i32
    %c0_i32_0 = arith.constant 0 : i32
    %c0_i32_1 = arith.constant 0 : i32
    return %c0_i32, %c0_i32_0 : i32, i32
  }
  func.func @transform_4(%arg0: i32) -> (i32, i32) {
    %c0_i32 = arith.constant 0 : i32
    %c0_i32_0 = arith.constant 0 : i32
    %c0_i32_1 = arith.constant 0 : i32
    return %c0_i32, %c0_i32_0 : i32, i32
  }
  func.func @transform_5(%arg0: i32) -> (i32, i32) {
    %c0_i32 = arith.constant 0 : i32
    %c0_i32_0 = arith.constant 0 : i32
    %c0_i32_1 = arith.constant 0 : i32
    return %c0_i32, %c0_i32_0 : i32, i32
  }
  func.func @transform_6(%arg0: i32) -> (i32, i32) {
    %c0_i32 = arith.constant 0 : i32
    %c0_i32_0 = arith.constant 0 : i32
    %c0_i32_1 = arith.constant 0 : i32
    return %c0_i32, %c0_i32_0 : i32, i32
  }
}

</mosaic_0001>

<llo_original>
// kernel: tpu_custom_call.1
$region0: #{tpu_custom_call.1}
  #allocation0 [shape = 'u32[]', space=smem, size = 0x4, offset = 0x4, fixed_abs, tag = 'smem constant byte address 0x4 - core index']
  #allocation1 [shape = 'u32[72,128]{1,0:T(1,128)}', space=vmem, size = 0x9000, scoped, tag = 'internal scratch']
  %s0 = inlined_call_operand.hbm [shape: f32[8,128], index: 0, kind: input, shape index: {}]
  %s1 = inlined_call_operand.hbm [shape: f32[40,128], index: 1, kind: input, shape index: {}]
  %s2 = inlined_call_operand.hbm [shape: f32[128,896], index: 2, kind: input, shape index: {}]
  %s3 = inlined_call_operand.hbm [shape: f32[1,896], index: 3, kind: input, shape index: {}]
  %s4 = inlined_call_operand.hbm [shape: f32[1,1], index: 4, kind: output, shape index: {0}]
  %s5 = inlined_call_operand.hbm [shape: f32[1,1], index: 5, kind: output, shape index: {1}]
  %s6 = inlined_call_operand.hbm [shape: f32[1,1], index: 6, kind: output, shape index: {2}]
  %7 = xla_tuple %s4, %s5, %s6
  %s8 = sld [smem:[#allocation0]]
  $region58: #{tpu_custom_call.1} parent=0
    _
  %s10 = ssub.s32 1, %s8
  %s11 = scalar_select 0, %s10, %s8
  $region1: #{tpu_custom_call.1} parent=0
    #allocation2 [shape = 'u8[4096]{0}', space=vmem, size = 0x1000, scoped, tag = 'input window, operand 0, single buffered']
    #allocation3 [shape = 's32[1]{0}', space=sflag, size = 0x4, scoped, tag = 'scoped memory for tpu_custom_call.1']
    #allocation4 [shape = 's32[1]{0}', space=sflag, size = 0x4, scoped, tag = 'scoped memory for tpu_custom_call.1']
    #allocation5 [shape = 'u8[20480]{0}', space=vmem, size = 0x5000, scoped, tag = 'input window, operand 1, single buffered']
    #allocation6 [shape = 's32[1]{0}', space=sflag, size = 0x4, scoped, tag = 'scoped memory for tpu_custom_call.1']
    #allocation7 [shape = 'u8[458752]{0}', space=vmem, size = 0x70000, scoped, tag = 'input window, operand 2, single buffered']
    #allocation8 [shape = 'u8[3584]{0}', space=vmem, size = 0x1000, scoped, tag = 'input window, operand 3, single buffered']
    #allocation9 [shape = 's32[1]{0}', space=sflag, size = 0x4, scoped, tag = 'scoped memory for tpu_custom_call.1']
    #allocation10 [shape = 'u8[512]{0}', space=vmem, size = 0x400, scoped, tag = 'output window, operand 0, single buffered']
    #allocation11 [shape = 'u8[512]{0}', space=vmem, size = 0x400, scoped, tag = 'output window, operand 1, single buffered']
    #allocation12 [shape = 's32[1]{0}', space=sflag, size = 0x4, scoped, tag = 'scoped memory for tpu_custom_call.1']
    #allocation13 [shape = 'u8[512]{0}', space=vmem, size = 0x400, scoped, tag = 'output window, operand 2, single buffered']
    %12 = vsyncpa [#allocation3], 0
    %13 = vsyncpa [#allocation6], 0
    %14 = vsyncpa [#allocation9], 0
    %15 = vsyncpa [#allocation4], 0
    %16 = vsyncpa [#allocation12], 0
    // Predicated region
    $region2: #{tpu_custom_call.1} parent=1 // pred_check
      _
    $region3: #{tpu_custom_call.1} parent=1 // pred_check_branch
      %18 = sbr.rel (0) target = $region5
    $region4: #{tpu_custom_call.1} parent=1 // pred_region
      %20 = vsyncadd [#allocation3], 0
      %s22 = sshll.u32 %s0, 4
      %s23 = int_to_ptr.hbm [resolvable:$true] %s22
      %s24 = sshll.u32 [#allocation2], 4
      %s25 = int_to_ptr.vmem [resolvable:$true] %s24
      %27 = dma.hbm_to_vmem [thread:$0]  %s23, 128, %s25, [#allocation3]
    $region5: #{tpu_custom_call.1} parent=1 // pred_fallthru
      _
    // Predicated region
    $region6: #{tpu_custom_call.1} parent=1 // pred_check
      _
    $region7: #{tpu_custom_call.1} parent=1 // pred_check_branch
      %29 = sbr.rel (0) target = $region9
    $region8: #{tpu_custom_call.1} parent=1 // pred_region
      %31 = vsyncadd [#allocation6], 0
      %s32 = sshll.u32 %s1, 4
      %s33 = int_to_ptr.hbm [resolvable:$true] %s32
      %s34 = sshll.u32 [#allocation5], 4
      %s35 = int_to_ptr.vmem [resolvable:$true] %s34
      %40 = dma.hbm_to_vmem [thread:$0]  %s33, 640, %s35, [#allocation6], 128, 128, 8
    $region9: #{tpu_custom_call.1} parent=1 // pred_fallthru
      _
    // Predicated region
    $region10: #{tpu_custom_call.1} parent=1 // pred_check
      _
    $region11: #{tpu_custom_call.1} parent=1 // pred_check_branch
      %42 = sbr.rel (0) target = $region13
    $region12: #{tpu_custom_call.1} parent=1 // pred_region
      %44 = vsyncadd [#allocation6], 0
      %s45 = sshll.u32 %s2, 4
      %s46 = int_to_ptr.hbm [resolvable:$true] %s45
      %s47 = sshll.u32 [#allocation7], 4
      %s48 = int_to_ptr.vmem [resolvable:$true] %s47
      %53 = dma.hbm_to_vmem [thread:$0]  %s46, 14336, %s48, [#allocation6], 896, 896, 56
    $region13: #{tpu_custom_call.1} parent=1 // pred_fallthru
      _
    // Predicated region
    $region14: #{tpu_custom_call.1} parent=1 // pred_check
      _
    $region15: #{tpu_custom_call.1} parent=1 // pred_check_branch
      %55 = sbr.rel (0) target = $region17
    $region16: #{tpu_custom_call.1} parent=1 // pred_region
      %57 = vsyncadd [#allocation9], 0
      %s59 = sshll.u32 %s3, 4
      %s60 = int_to_ptr.hbm [resolvable:$true] %s59
      %s61 = sshll.u32 [#allocation8], 4
      %s62 = int_to_ptr.vmem [resolvable:$true] %s61
      %64 = dma.hbm_to_vmem [thread:$0]  %s60, 112, %s62, [#allocation9]
    $region17: #{tpu_custom_call.1} parent=1 // pred_fallthru
      _
    // Predicated region
    $region18: #{tpu_custom_call.1} parent=1 // pred_check
      _
    $region19: #{tpu_custom_call.1} parent=1 // pred_check_branch
      %66 = sbr.rel (0) target = $region21
    $region20: #{tpu_custom_call.1} parent=1 // pred_region
      %68 = dma.done [#allocation3], 128
    $region21: #{tpu_custom_call.1} parent=1 // pred_fallthru
      _
    // Predicated region
    $region22: #{tpu_custom_call.1} parent=1 // pred_check
      _
    $region23: #{tpu_custom_call.1} parent=1 // pred_check_branch
      %70 = sbr.rel (0) target = $region25
    $region24: #{tpu_custom_call.1} parent=1 // pred_region
      %72 = dma.done [#allocation6], 640
    $region25: #{tpu_custom_call.1} parent=1 // pred_fallthru
      _
    // Predicated region
    $region26: #{tpu_custom_call.1} parent=1 // pred_check
      _
    $region27: #{tpu_custom_call.1} parent=1 // pred_check_branch
      %74 = sbr.rel (0) target = $region29
    $region28: #{tpu_custom_call.1} parent=1 // pred_region
      %76 = dma.done [#allocation6], 14336
    $region29: #{tpu_custom_call.1} parent=1 // pred_fallthru
      _
    // Predicated region
    $region30: #{tpu_custom_call.1} parent=1 // pred_check
      _
    $region31: #{tpu_custom_call.1} parent=1 // pred_check_branch
      %78 = sbr.rel (0) target = $region33
    $region32: #{tpu_custom_call.1} parent=1 // pred_region
      %80 = dma.done [#allocation9], 112
    $region33: #{tpu_custom_call.1} parent=1 // pred_fallthru
      _
    %v81 = vld [vmem:[#allocation2] sm:$0xff]
    %v82 = vld [vmem:[#allocation5] sm:$0xff]
    %v83 = vld [vmem:[#allocation5 + $0x8] sm:$0xff]
    %v84 = vld [vmem:[#allocation5 + $0x10] sm:$0xff]
    %v85 = vld [vmem:[#allocation5 + $0x18] sm:$0xff]
    %v86 = vld [vmem:[#allocation5 + $0x20] sm:$0xff]
    %v87 = vld [vmem:[#allocation7] sm:$0xff]
    %v88 = vld [vmem:[#allocation7 + $0x38] sm:$0xff]
    %v89 = vld [vmem:[#allocation7 + $0x70] sm:$0xff]
    %v90 = vld [vmem:[#allocation7 + $0xa8] sm:$0xff]
    %v91 = vld [vmem:[#allocation7 + $0xe0] sm:$0xff]
    %v92 = vld [vmem:[#allocation7 + $0x118] sm:$0xff]
    %v93 = vld [vmem:[#allocation7 + $0x150] sm:$0xff]
    %v94 = vld [vmem:[#allocation7 + $0x188] sm:$0xff]
    %v95 = vld [vmem:[#allocation7 + $0x1c0] sm:$0xff]
    %v96 = vld [vmem:[#allocation7 + $0x1f8] sm:$0xff]
    %v97 = vld [vmem:[#allocation7 + $0x230] sm:$0xff]
    %v98 = vld [vmem:[#allocation7 + $0x268] sm:$0xff]
    %v99 = vld [vmem:[#allocation7 + $0x2a0] sm:$0xff]
    %v100 = vld [vmem:[#allocation7 + $0x2d8] sm:$0xff]
    %v101 = vld [vmem:[#allocation7 + $0x310] sm:$0xff]
    %v102 = vld [vmem:[#allocation7 + $0x348] sm:$0xff]
    %v103 = vld [vmem:[#allocation8] sm:$0x1]
    %v105 = vperm.slane %v103, 0
    %107 = vmatpush.msra.mxu0 %v102
    %108 = vmatpush.msra.mxu0 %v101
    %109 = vmatpush.msra.mxu0 %v100
    %110 = vmatpush.msra.mxu0 %v99
    %111 = vmatpush.msra.mxu0 %v98
    %112 = vmatpush.msra.mxu0 %v97
    %113 = vmatpush.msra.mxu0 %v96
    %114 = vmatpush.msra.mxu0 %v95
    %115 = vmatpush.msra.mxu0 %v94
    %116 = vmatpush.msra.mxu0 %v93
    %117 = vmatpush.msra.mxu0 %v92
    %118 = vmatpush.msra.mxu0 %v91
    %119 = vmatpush.msra.mxu0 %v90
    %120 = vmatpush.msra.mxu0 %v89
    %121 = vmatpush.msra.mxu0 %v88
    %122 = vmatpush.msra.mxu0 %v87
    %123 = vmatmul.f32.gmra.mxu0 %v81
    %v124 = vpop.f32.mrf.mxu0
    %v125 = vadd.f32 %v105, %v124
    %126 = vdwg.mxu0
    %vm127 = vcmp.gt.f32.partialorder %v125, 0.0
    %v128 = vmul.f32 %v125, 0.01
    %v129 = vsel %vm127, %v125, %v128
    %v130 = vld [vmem:[#allocation7 + $0x8] sm:$0xff]
    %v131 = vld [vmem:[#allocation7 + $0x40] sm:$0xff]
    %v132 = vld [vmem:[#allocation7 + $0x78] sm:$0xff]
    %v133 = vld [vmem:[#allocation7 + $0xb0] sm:$0xff]
    %v134 = vld [vmem:[#allocation7 + $0xe8] sm:$0xff]
    %v135 = vld [vmem:[#allocation7 + $0x120] sm:$0xff]
    %v136 = vld [vmem:[#allocation7 + $0x158] sm:$0xff]
    %v137 = vld [vmem:[#allocation7 + $0x190] sm:$0xff]
    %v138 = vld [vmem:[#allocation7 + $0x1c8] sm:$0xff]
    %v139 = vld [vmem:[#allocation7 + $0x200] sm:$0xff]
    %v140 = vld [vmem:[#allocation7 + $0x238] sm:$0xff]
    %v141 = vld [vmem:[#allocation7 + $0x270] sm:$0xff]
    %v142 = vld [vmem:[#allocation7 + $0x2a8] sm:$0xff]
    %v143 = vld [vmem:[#allocation7 + $0x2e0] sm:$0xff]
    %v144 = vld [vmem:[#allocation7 + $0x318] sm:$0xff]
    %v145 = vld [vmem:[#allocation7 + $0x350] sm:$0xff]
    %v146 = vld [vmem:[#allocation8 + $0x1] sm:$0x1]
    %v148 = vperm.slane %v146, 0
    %150 = vmatpush.msra.mxu0 %v145
    %151 = vmatpush.msra.mxu0 %v144
    %152 = vmatpush.msra.mxu0 %v143
    %153 = vmatpush.msra.mxu0 %v142
    %154 = vmatpush.msra.mxu0 %v141
    %155 = vmatpush.msra.mxu0 %v140
    %156 = vmatpush.msra.mxu0 %v139
    %157 = vmatpush.msra.mxu0 %v138
    %158 = vmatpush.msra.mxu0 %v137
    %159 = vmatpush.msra.mxu0 %v136
    %160 = vmatpush.msra.mxu0 %v135
    %161 = vmatpush.msra.mxu0 %v134
    %162 = vmatpush.msra.mxu0 %v133
    %163 = vmatpush.msra.mxu0 %v132
    %164 = vmatpush.msra.mxu0 %v131
    %165 = vmatpush.msra.mxu0 %v130
    %166 = vmatmul.f32.gmra.mxu0 %v129
    %v167 = vpop.f32.mrf.mxu0
    %v168 = vadd.f32 %v148, %v167
    %169 = vdwg.mxu0
    %vm170 = vcmp.gt.f32.partialorder %v168, 0.0
    %v171 = vmul.f32 %v168, 0.01
    %v172 = vsel %vm170, %v168, %v171
    %v173 = vld [vmem:[#allocation7 + $0x10] sm:$0xff]
    %v174 = vld [vmem:[#allocation7 + $0x18] sm:$0xff]
    %v175 = vld [vmem:[#allocation7 + $0x48] sm:$0xff]
    %v176 = vld [vmem:[#allocation7 + $0x50] sm:$0xff]
    %v177 = vld [vmem:[#allocation7 + $0x80] sm:$0xff]
    %v178 = vld [vmem:[#allocation7 + $0x88] sm:$0xff]
    %v179 = vld [vmem:[#allocation7 + $0xb8] sm:$0xff]
    %v180 = vld [vmem:[#allocation7 + $0xc0] sm:$0xff]
    %v181 = vld [vmem:[#allocation7 + $0xf0] sm:$0xff]
    %v182 = vld [vmem:[#allocation7 + $0xf8] sm:$0xff]
    %v183 = vld [vmem:[#allocation7 + $0x128] sm:$0xff]
    %v184 = vld [vmem:[#allocation7 + $0x130] sm:$0xff]
    %v185 = vld [vmem:[#allocation7 + $0x160] sm:$0xff]
    %v186 = vld [vmem:[#allocation7 + $0x168] sm:$0xff]
    %v187 = vld [vmem:[#allocation7 + $0x198] sm:$0xff]
    %v188 = vld [vmem:[#allocation7 + $0x1a0] sm:$0xff]
    %v189 = vld [vmem:[#allocation7 + $0x1d0] sm:$0xff]
    %v190 = vld [vmem:[#allocation7 + $0x1d8] sm:$0xff]
    %v191 = vld [vmem:[#allocation7 + $0x208] sm:$0xff]
    %v192 = vld [vmem:[#allocation7 + $0x210] sm:$0xff]
    %v193 = vld [vmem:[#allocation7 + $0x240] sm:$0xff]
    %v194 = vld [vmem:[#allocation7 + $0x248] sm:$0xff]
    %v195 = vld [vmem:[#allocation7 + $0x278] sm:$0xff]
    %v196 = vld [vmem:[#allocation7 + $0x280] sm:$0xff]
    %v197 = vld [vmem:[#allocation7 + $0x2b0] sm:$0xff]
    %v198 = vld [vmem:[#allocation7 + $0x2b8] sm:$0xff]
    %v199 = vld [vmem:[#allocation7 + $0x2e8] sm:$0xff]
    %v200 = vld [vmem:[#allocation7 + $0x2f0] sm:$0xff]
    %v201 = vld [vmem:[#allocation7 + $0x320] sm:$0xff]
    %v202 = vld [vmem:[#allocation7 + $0x328] sm:$0xff]
    %v203 = vld [vmem:[#allocation7 + $0x358] sm:$0xff]
    %v204 = vld [vmem:[#allocation7 + $0x360] sm:$0xff]
    %v205 = vld [vmem:[#allocation8 + $0x2] sm:$0x3]
    %v207 = vperm.slane %v205, 0
    %v208 = vperm.slane %v205, 1
    %211 = vmatpush.msra.mxu0 %v203
    %212 = vmatpush.msra.mxu0 %v201
    %213 = vmatpush.msra.mxu0 %v199
    %214 = vmatpush.msra.mxu0 %v197
    %215 = vmatpush.msra.mxu0 %v195
    %216 = vmatpush.msra.mxu0 %v193
    %217 = vmatpush.msra.mxu0 %v191
    %218 = vmatpush.msra.mxu0 %v189
    %219 = vmatpush.msra.mxu0 %v187
    %220 = vmatpush.msra.mxu0 %v185
    %221 = vmatpush.msra.mxu0 %v183
    %222 = vmatpush.msra.mxu0 %v181
    %223 = vmatpush.msra.mxu0 %v179
    %224 = vmatpush.msra.mxu0 %v177
    %225 = vmatpush.msra.mxu0 %v175
    %226 = vmatpush.msra.mxu0 %v173
    %227 = vmatmul.f32.gmra.mxu0 %v172
    %v228 = vpop.f32.mrf.mxu0
    %v229 = vadd.f32 %v207, %v228
    %230 = vdwg.mxu0
    %231 = vmatpush.msra.mxu0 %v204
    %232 = vmatpush.msra.mxu0 %v202
    %233 = vmatpush.msra.mxu0 %v200
    %234 = vmatpush.msra.mxu0 %v198
    %235 = vmatpush.msra.mxu0 %v196
    %236 = vmatpush.msra.mxu0 %v194
    %237 = vmatpush.msra.mxu0 %v192
    %238 = vmatpush.msra.mxu0 %v190
    %239 = vmatpush.msra.mxu0 %v188
    %240 = vmatpush.msra.mxu0 %v186
    %241 = vmatpush.msra.mxu0 %v184
    %242 = vmatpush.msra.mxu0 %v182
    %243 = vmatpush.msra.mxu0 %v180
    %244 = vmatpush.msra.mxu0 %v178
    %245 = vmatpush.msra.mxu0 %v176
    %246 = vmatpush.msra.mxu0 %v174
    %247 = vmatmul.f32.gmra.mxu0 %v172
    %v248 = vpop.f32.mrf.mxu0
    %v249 = vadd.f32 %v208, %v248
    %250 = vdwg.mxu0
    %v251 = vmul.f32 %v249, 0.5
    %v252 = vmul.f32 %v251, 1.442695
    %v253 = vpow.pop %v252
    %v254 = vmul.f32 %v253, %v82
    %v255 = vmul.f32 %v253, %v83
    %v256 = vmul.f32 %v253, %v84
    %v257 = vmul.f32 %v253, %v85
    %v258 = vmul.f32 %v253, %v86
    %v259 = vadd.f32 %v229, %v254
    %v260 = vadd.f32 %v229, %v255
    %v261 = vadd.f32 %v229, %v256
    %v262 = vadd.f32 %v229, %v257
    %v263 = vadd.f32 %v229, %v258
    %v264 = vld [vmem:[#allocation7 + $0x20] sm:$0xff]
    %v265 = vld [vmem:[#allocation7 + $0x58] sm:$0xff]
    %v266 = vld [vmem:[#allocation7 + $0x90] sm:$0xff]
    %v267 = vld [vmem:[#allocation7 + $0xc8] sm:$0xff]
    %v268 = vld [vmem:[#allocation7 + $0x100] sm:$0xff]
    %v269 = vld [vmem:[#allocation7 + $0x138] sm:$0xff]
    %v270 = vld [vmem:[#allocation7 + $0x170] sm:$0xff]
    %v271 = vld [vmem:[#allocation7 + $0x1a8] sm:$0xff]
    %v272 = vld [vmem:[#allocation7 + $0x1e0] sm:$0xff]
    %v273 = vld [vmem:[#allocation7 + $0x218] sm:$0xff]
    %v274 = vld [vmem:[#allocation7 + $0x250] sm:$0xff]
    %v275 = vld [vmem:[#allocation7 + $0x288] sm:$0xff]
    %v276 = vld [vmem:[#allocation7 + $0x2c0] sm:$0xff]
    %v277 = vld [vmem:[#allocation7 + $0x2f8] sm:$0xff]
    %v278 = vld [vmem:[#allocation7 + $0x330] sm:$0xff]
    %v279 = vld [vmem:[#allocation7 + $0x368] sm:$0xff]
    %v280 = vld [vmem:[#allocation8 + $0x4] sm:$0x1]
    %v282 = vperm.slane %v280, 0
    %284 = vmatpush.msra.mxu0 %v279
    %285 = vmatpush.msra.mxu0 %v278
    %286 = vmatpush.msra.mxu0 %v277
    %287 = vmatpush.msra.mxu0 %v276
    %288 = vmatpush.msra.mxu0 %v275
    %289 = vmatpush.msra.mxu0 %v274
    %290 = vmatpush.msra.mxu0 %v273
    %291 = vmatpush.msra.mxu0 %v272
    %292 = vmatpush.msra.mxu0 %v271
    %293 = vmatpush.msra.mxu0 %v270
    %294 = vmatpush.msra.mxu0 %v269
    %295 = vmatpush.msra.mxu0 %v268
    %296 = vmatpush.msra.mxu0 %v267
    %297 = vmatpush.msra.mxu0 %v266
    %298 = vmatpush.msra.mxu0 %v265
    %299 = vmatpush.msra.mxu0 %v264
    %300 = vmatmul.f32.gmra.mxu0 %v259
    %v301 = vpop.f32.mrf.mxu0
    %v302 = vadd.f32 %v282, %v301
    %303 = vmatmul.f32.gmra.mxu0 %v260
    %v304 = vpop.f32.mrf.mxu0
    %v305 = vadd.f32 %v282, %v304
    %306 = vmatmul.f32.gmra.mxu0 %v261
    %v307 = vpop.f32.mrf.mxu0
    %v308 = vadd.f32 %v282, %v307
    %309 = vmatmul.f32.gmra.mxu0 %v262
    %v310 = vpop.f32.mrf.mxu0
    %v311 = vadd.f32 %v282, %v310
    %312 = vmatmul.f32.gmra.mxu0 %v263
    %v313 = vpop.f32.mrf.mxu0
    %v314 = vadd.f32 %v282, %v313
    %315 = vdwg.mxu0
    %vm316 = vcmp.gt.f32.partialorder %v302, 0.0
    %vm317 = vcmp.gt.f32.partialorder %v305, 0.0
    %vm318 = vcmp.gt.f32.partialorder %v308, 0.0
    %vm319 = vcmp.gt.f32.partialorder %v311, 0.0
    %vm320 = vcmp.gt.f32.partialorder %v314, 0.0
    %v321 = vmul.f32 %v302, 0.01
    %v322 = vmul.f32 %v305, 0.01
    %v323 = vmul.f32 %v308, 0.01
    %v324 = vmul.f32 %v311, 0.01
    %v325 = vmul.f32 %v314, 0.01
    %v326 = vsel %vm316, %v302, %v321
    %v327 = vsel %vm317, %v305, %v322
    %v328 = vsel %vm318, %v308, %v323
    %v329 = vsel %vm319, %v311, %v324
    %v330 = vsel %vm320, %v314, %v325
    %v331 = vld [vmem:[#allocation7 + $0x28] sm:$0xff]
    %v332 = vld [vmem:[#allocation7 + $0x60] sm:$0xff]
    %v333 = vld [vmem:[#allocation7 + $0x98] sm:$0xff]
    %v334 = vld [vmem:[#allocation7 + $0xd0] sm:$0xff]
    %v335 = vld [vmem:[#allocation7 + $0x108] sm:$0xff]
    %v336 = vld [vmem:[#allocation7 + $0x140] sm:$0xff]
    %v337 = vld [vmem:[#allocation7 + $0x178] sm:$0xff]
    %v338 = vld [vmem:[#allocation7 + $0x1b0] sm:$0xff]
    %v339 = vld [vmem:[#allocation7 + $0x1e8] sm:$0xff]
    %v340 = vld [vmem:[#allocation7 + $0x220] sm:$0xff]
    %v341 = vld [vmem:[#allocation7 + $0x258] sm:$0xff]
    %v342 = vld [vmem:[#allocation7 + $0x290] sm:$0xff]
    %v343 = vld [vmem:[#allocation7 + $0x2c8] sm:$0xff]
    %v344 = vld [vmem:[#allocation7 + $0x300] sm:$0xff]
    %v345 = vld [vmem:[#allocation7 + $0x338] sm:$0xff]
    %v346 = vld [vmem:[#allocation7 + $0x370] sm:$0xff]
    %v347 = vld [vmem:[#allocation8 + $0x5] sm:$0x1]
    %v349 = vperm.slane %v347, 0
    %351 = vmatpush.msra.mxu0 %v346
    %352 = vmatpush.msra.mxu0 %v345
    %353 = vmatpush.msra.mxu0 %v344
    %354 = vmatpush.msra.mxu0 %v343
    %355 = vmatpush.msra.mxu0 %v342
    %356 = vmatpush.msra.mxu0 %v341
    %357 = vmatpush.msra.mxu0 %v340
    %358 = vmatpush.msra.mxu0 %v339
    %359 = vmatpush.msra.mxu0 %v338
    %360 = vmatpush.msra.mxu0 %v337
    %361 = vmatpush.msra.mxu0 %v336
    %362 = vmatpush.msra.mxu0 %v335
    %363 = vmatpush.msra.mxu0 %v334
    %364 = vmatpush.msra.mxu0 %v333
    %365 = vmatpush.msra.mxu0 %v332
    %366 = vmatpush.msra.mxu0 %v331
    %367 = vmatmul.f32.gmra.mxu0 %v326
    %v368 = vpop.f32.mrf.mxu0
    %v369 = vadd.f32 %v349, %v368
    %370 = vmatmul.f32.gmra.mxu0 %v327
    %v371 = vpop.f32.mrf.mxu0
    %v372 = vadd.f32 %v349, %v371
    %373 = vmatmul.f32.gmra.mxu0 %v328
    %v374 = vpop.f32.mrf.mxu0
    %v375 = vadd.f32 %v349, %v374
    %376 = vmatmul.f32.gmra.mxu0 %v329
    %v377 = vpop.f32.mrf.mxu0
    %v378 = vadd.f32 %v349, %v377
    %379 = vmatmul.f32.gmra.mxu0 %v330
    %v380 = vpop.f32.mrf.mxu0
    %v381 = vadd.f32 %v349, %v380
    %382 = vdwg.mxu0
    %vm383 = vcmp.gt.f32.partialorder %v369, 0.0
    %vm384 = vcmp.gt.f32.partialorder %v372, 0.0
    %vm385 = vcmp.gt.f32.partialorder %v375, 0.0
    %vm386 = vcmp.gt.f32.partialorder %v378, 0.0
    %vm387 = vcmp.gt.f32.partialorder %v381, 0.0
    %v388 = vmul.f32 %v369, 0.01
    %v389 = vmul.f32 %v372, 0.01
    %v390 = vmul.f32 %v375, 0.01
    %v391 = vmul.f32 %v378, 0.01
    %v392 = vmul.f32 %v381, 0.01
    %v393 = vsel %vm383, %v369, %v388
    %v394 = vsel %vm384, %v372, %v389
    %v395 = vsel %vm385, %v375, %v390
    %v396 = vsel %vm386, %v378, %v391
    %v397 = vsel %vm387, %v381, %v392
    %v398 = vld [vmem:[#allocation7 + $0x30] sm:$0xff]
    %v399 = vld [vmem:[#allocation7 + $0x68] sm:$0xff]
    %v400 = vld [vmem:[#allocation7 + $0xa0] sm:$0xff]
    %v401 = vld [vmem:[#allocation7 + $0xd8] sm:$0xff]
    %v402 = vld [vmem:[#allocation7 + $0x110] sm:$0xff]
    %v403 = vld [vmem:[#allocation7 + $0x148] sm:$0xff]
    %v404 = vld [vmem:[#allocation7 + $0x180] sm:$0xff]
    %v405 = vld [vmem:[#allocation7 + $0x1b8] sm:$0xff]
    %v406 = vld [vmem:[#allocation7 + $0x1f0] sm:$0xff]
    %v407 = vld [vmem:[#allocation7 + $0x228] sm:$0xff]
    %v408 = vld [vmem:[#allocation7 + $0x260] sm:$0xff]
    %v409 = vld [vmem:[#allocation7 + $0x298] sm:$0xff]
    %v410 = vld [vmem:[#allocation7 + $0x2d0] sm:$0xff]
    %v411 = vld [vmem:[#allocation7 + $0x308] sm:$0xff]
    %v412 = vld [vmem:[#allocation7 + $0x340] sm:$0xff]
    %v413 = vld [vmem:[#allocation7 + $0x378] sm:$0xff]
    %v414 = vld [vmem:[#allocation8 + $0x6] sm:$0x1]
    %v416 = vperm.slane %v414, 0
    %418 = vmatpush.msra.mxu0 %v413
    %419 = vmatpush.msra.mxu0 %v412
    %420 = vmatpush.msra.mxu0 %v411
    %421 = vmatpush.msra.mxu0 %v410
    %422 = vmatpush.msra.mxu0 %v409
    %423 = vmatpush.msra.mxu0 %v408
    %424 = vmatpush.msra.mxu0 %v407
    %425 = vmatpush.msra.mxu0 %v406
    %426 = vmatpush.msra.mxu0 %v405
    %427 = vmatpush.msra.mxu0 %v404
    %428 = vmatpush.msra.mxu0 %v403
    %429 = vmatpush.msra.mxu0 %v402
    %430 = vmatpush.msra.mxu0 %v401
    %431 = vmatpush.msra.mxu0 %v400
    %432 = vmatpush.msra.mxu0 %v399
    %433 = vmatpush.msra.mxu0 %v398
    %434 = vmatmul.f32.gmra.mxu0 %v393
    %v435 = vpop.f32.mrf.mxu0
    %v436 = vadd.f32 %v416, %v435
    %437 = vmatmul.f32.gmra.mxu0 %v394
    %v438 = vpop.f32.mrf.mxu0
    %v439 = vadd.f32 %v416, %v438
    %440 = vmatmul.f32.gmra.mxu0 %v395
    %v441 = vpop.f32.mrf.mxu0
    %v442 = vadd.f32 %v416, %v441
    %443 = vmatmul.f32.gmra.mxu0 %v396
    %v444 = vpop.f32.mrf.mxu0
    %v445 = vadd.f32 %v416, %v444
    %446 = vmatmul.f32.gmra.mxu0 %v397
    %v447 = vpop.f32.mrf.mxu0
    %v448 = vadd.f32 %v416, %v447
    %449 = vdwg.mxu0
    %v450 = vlaneseq
    %v451 = vand.u32 %v450, 127
    %vm452 = vcmp.lt.s32.totalorder %v451, 4
    %v453 = vsel %vm452, 1, 0
    %v454 = vcvt.s32.f32 %v453
    %vm455 = vcmp.lt.s32.totalorder %v451, 2
    %v456 = vsel %vm455, 1, 0
    %v457 = vcvt.s32.f32 %v456
    %v458 = vsub.f32 %v436, %v81
    %v459 = vsub.f32 %v439, %v81
    %v460 = vsub.f32 %v442, %v81
    %v461 = vsub.f32 %v445, %v81
    %v462 = vsub.f32 %v448, %v81
    %v463 = vmul.f32 %v458, %v458
    %v464 = vmul.f32 %v459, %v459
    %v465 = vmul.f32 %v460, %v460
    %v466 = vmul.f32 %v461, %v461
    %v467 = vmul.f32 %v462, %v462
    %v468 = vmul.f32 %v454, %v463
    %v469 = vmul.f32 %v454, %v464
    %v470 = vmul.f32 %v454, %v465
    %v471 = vmul.f32 %v454, %v466
    %v472 = vmul.f32 %v454, %v467
    %473 = vadd.xlane.f32.xlu0 %v468
    %v474 = vpop.xlane.xlu0 %473
    %475 = vadd.xlane.f32.xlu0 %v469
    %v476 = vpop.xlane.xlu0 %475
    %477 = vadd.xlane.f32.xlu0 %v470
    %v478 = vpop.xlane.xlu0 %477
    %479 = vadd.xlane.f32.xlu0 %v471
    %v480 = vpop.xlane.xlu0 %479
    %481 = vadd.xlane.f32.xlu0 %v472
    %v482 = vpop.xlane.xlu0 %481
    %v483 = vadd.f32 %v474, %v476
    %v484 = vadd.f32 %v483, %v478
    %v485 = vadd.f32 %v484, %v480
    %v486 = vadd.f32 %v485, %v482
    %v487 = vrot.slane %v486, 4
    %v488 = vadd.f32 %v486, %v487
    %v489 = vrot.slane %v488, 2
    %v490 = vadd.f32 %v488, %v489
    %v491 = vrot.slane %v490, 1
    %v492 = vadd.f32 %v490, %v491
    %v493 = vmul.f32 %v492, 0.025
    %v494 = vmul.f32 %v259, %v259
    %v495 = vmul.f32 %v260, %v260
    %v496 = vmul.f32 %v261, %v261
    %v497 = vmul.f32 %v262, %v262
    %v498 = vmul.f32 %v263, %v263
    %v499 = vrcp.pop 3.0
    %v500 = vmul.f32 3.0, %v499
    %v501 = vsub.f32 1.0, %v500
    %v502 = vmul.f32 %v499, %v501
    %v503 = vadd.f32 %v499, %v502
    %vm504 = vweird.f32 %v499
    %v505 = vsel %vm504, %v499, %v503
    %v506 = vmul.f32 %v494, %v505
    %v507 = vmul.f32 %v495, %v505
    %v508 = vmul.f32 %v496, %v505
    %v509 = vmul.f32 %v497, %v505
    %v510 = vmul.f32 %v498, %v505
    %v511 = vadd.f32 %v506, 1.0
    %v512 = vadd.f32 %v507, 1.0
    %v513 = vadd.f32 %v508, 1.0
    %v514 = vadd.f32 %v509, 1.0
    %v515 = vadd.f32 %v510, 1.0
    %v516 = vlog2.pop %v511
    %v517 = vmul.f32 %v516, 0.6931472
    %v518 = vlog2.pop %v512
    %v519 = vmul.f32 %v518, 0.6931472
    %v520 = vlog2.pop %v513
    %v521 = vmul.f32 %v520, 0.6931472
    %v522 = vlog2.pop %v514
    %v523 = vmul.f32 %v522, 0.6931472
    %v524 = vlog2.pop %v515
    %v525 = vmul.f32 %v524, 0.6931472
    %v526 = vmul.f32 %v517, 4.0
    %v527 = vmul.f32 %v519, 4.0
    %v528 = vmul.f32 %v521, 4.0
    %v529 = vmul.f32 %v523, 4.0
    %v530 = vmul.f32 %v525, 4.0
    %v531 = vadd.f32 %v249, 2.837877
    %v532 = vsub.f32 %v526, %v531
    %v533 = vsub.f32 %v527, %v531
    %v534 = vsub.f32 %v528, %v531
    %v535 = vsub.f32 %v529, %v531
    %v536 = vsub.f32 %v530, %v531
    %v537 = vmul.f32 %v457, %v532
    %v538 = vmul.f32 %v457, %v533
    %v539 = vmul.f32 %v457, %v534
    %v540 = vmul.f32 %v457, %v535
    %v541 = vmul.f32 %v457, %v536
    %542 = vadd.xlane.f32.xlu0 %v537
    %v543 = vpop.xlane.xlu0 %542
    %544 = vadd.xlane.f32.xlu0 %v538
    %v545 = vpop.xlane.xlu0 %544
    %546 = vadd.xlane.f32.xlu0 %v539
    %v547 = vpop.xlane.xlu0 %546
    %548 = vadd.xlane.f32.xlu0 %v540
    %v549 = vpop.xlane.xlu0 %548
    %550 = vadd.xlane.f32.xlu0 %v541
    %v551 = vpop.xlane.xlu0 %550
    %v552 = vadd.f32 %v543, %v545
    %v553 = vadd.f32 %v552, %v547
    %v554 = vadd.f32 %v553, %v549
    %v555 = vadd.f32 %v554, %v551
    %v556 = vrot.slane %v555, 4
    %v557 = vadd.f32 %v555, %v556
    %v558 = vrot.slane %v557, 2
    %v559 = vadd.f32 %v557, %v558
    %v560 = vrot.slane %v559, 1
    %v561 = vadd.f32 %v559, %v560
    %v562 = vmul.f32 %v561, 0.025
    %v563 = vsub.f32 %v562, -4.0035553
    %v564 = vadd.f32 %v493, %v563
    %vm565 = vcmask 0
    %566 = vst.msk [vmem:[#allocation10] sm:$0x1] %vm565, %v493
    %567 = vst.msk [vmem:[#allocation11] sm:$0x1] %vm565, %v563
    %568 = vst.msk [vmem:[#allocation13] sm:$0x1] %vm565, %v564
    // Predicated region
    $region34: #{tpu_custom_call.1} parent=1 // pred_check
      _
    $region35: #{tpu_custom_call.1} parent=1 // pred_check_branch
      %570 = sbr.rel (0) target = $region37
    $region36: #{tpu_custom_call.1} parent=1 // pred_region
      %572 = vsyncadd [#allocation4], 0
      %s574 = sshll.u32 [#allocation10], 4
      %s575 = int_to_ptr.vmem [resolvable:$true] %s574
      %s576 = sshll.u32 %s4, 4
      %s577 = int_to_ptr.hbm [resolvable:$true] %s576
      %579 = dma.vmem_to_hbm [thread:$0]  %s575, 16, %s577, [#allocation4]
    $region37: #{tpu_custom_call.1} parent=1 // pred_fallthru
      _
    // Predicated region
    $region38: #{tpu_custom_call.1} parent=1 // pred_check
      _
    $region39: #{tpu_custom_call.1} parent=1 // pred_check_branch
      %581 = sbr.rel (0) target = $region41
    $region40: #{tpu_custom_call.1} parent=1 // pred_region
      %583 = vsyncadd [#allocation12], 0
      %s585 = sshll.u32 [#allocation11], 4
      %s586 = int_to_ptr.vmem [resolvable:$true] %s585
      %s587 = sshll.u32 %s5, 4
      %s588 = int_to_ptr.hbm [resolvable:$true] %s587
      %590 = dma.vmem_to_hbm [thread:$0]  %s586, 16, %s588, [#allocation12]
    $region41: #{tpu_custom_call.1} parent=1 // pred_fallthru
      _
    // Predicated region
    $region42: #{tpu_custom_call.1} parent=1 // pred_check
      _
    $region43: #{tpu_custom_call.1} parent=1 // pred_check_branch
      %592 = sbr.rel (0) target = $region45
    $region44: #{tpu_custom_call.1} parent=1 // pred_region
      %594 = vsyncadd [#allocation12], 0
      %s596 = sshll.u32 [#allocation13], 4
      %s597 = int_to_ptr.vmem [resolvable:$true] %s596
      %s598 = sshll.u32 %s6, 4
      %s599 = int_to_ptr.hbm [resolvable:$true] %s598
      %601 = dma.vmem_to_hbm [thread:$0]  %s597, 16, %s599, [#allocation12]
    $region45: #{tpu_custom_call.1} parent=1 // pred_fallthru
      _
    // Predicated region
    $region46: #{tpu_custom_call.1} parent=1 // pred_check
      _
    $region47: #{tpu_custom_call.1} parent=1 // pred_check_branch
      %603 = sbr.rel (0) target = $region49
    $region48: #{tpu_custom_call.1} parent=1 // pred_region
      %605 = dma.done [#allocation4], 16
    $region49: #{tpu_custom_call.1} parent=1 // pred_fallthru
      _
    // Predicated region
    $region50: #{tpu_custom_call.1} parent=1 // pred_check
      _
    $region51: #{tpu_custom_call.1} parent=1 // pred_check_branch
      %607 = sbr.rel (0) target = $region53
    $region52: #{tpu_custom_call.1} parent=1 // pred_region
      %609 = dma.done [#allocation12], 16
    $region53: #{tpu_custom_call.1} parent=1 // pred_fallthru
      _
    // Predicated region
    $region54: #{tpu_custom_call.1} parent=1 // pred_check
      _
    $region55: #{tpu_custom_call.1} parent=1 // pred_check_branch
      %611 = sbr.rel (0) target = $region57
    $region56: #{tpu_custom_call.1} parent=1 // pred_region
      %613 = dma.done [#allocation12], 16
    $region57: #{tpu_custom_call.1} parent=1 // pred_fallthru
      _
    %614 = vsyncpa [#allocation3], 1
    %615 = vsyncpa [#allocation6], 1
    %616 = vsyncpa [#allocation9], 1
    %617 = vsyncpa [#allocation4], 1
    %618 = vsyncpa [#allocation12], 1

</llo_original>
